<compile_context>
chip_gen: v7x
topology: tpu7x:2x2x1
jax: 0.10.0
libtpu: 0.0.40
codegen_flags: <defaults>
</compile_context>

<pallas_src>
import functools

import jax
import jax.numpy as jnp
from jax.experimental import pallas as pl
from jax.experimental.pallas import tpu as pltpu

GN_EPS = 1e-5


def _largest_divisor_leq(n, cap):
    cap = max(1, min(n, cap))
    for t in range(cap, 0, -1):
        if n % t == 0:
            return t
    return 1


def _sa_kernel(p_ref, x_ref, out_ref, *, c_half, inv_hw):
    # p_ref:   (6, c_half, 1)  stacked [cweight, cbias, sweight, sbias, gn_w, gn_b]
    # x_ref:   (TB, TG, c_per, HW)
    # out_ref: (TB, TG, c_per, HW)

    # ---- channel-attention branch: x0 = first c_half channels of each group
    x0 = x_ref[:, :, :c_half, :]                               # (TB, TG, c_half, HW)
    pooled = jnp.sum(x0, axis=-1, keepdims=True) * inv_hw      # (TB, TG, c_half, 1)
    gate0 = jax.nn.sigmoid(p_ref[0] * pooled + p_ref[1])       # cweight * pool + cbias
    # store eagerly so out0/x0 don't stay live through the spatial branch
    out_ref[:, :, :c_half, :] = x0 * gate0

    # ---- spatial branch: per-channel GroupNorm + affine + sigmoid gate
    x1 = x_ref[:, :, c_half:, :]                               # (TB, TG, c_half, HW)
    sw, sb, gw, gnb = p_ref[2], p_ref[3], p_ref[4], p_ref[5]   # each (c_half, 1)
    mean = jnp.sum(x1, axis=-1, keepdims=True) * inv_hw
    d = x1 - mean                                              # two-pass variance
    var = jnp.sum(d * d, axis=-1, keepdims=True) * inv_hw
    inv_std = jax.lax.rsqrt(var + GN_EPS)
    # Fold GN affine + gate affine into one per-channel scale/offset:
    #   sw * (gw * d * inv_std + gnb) + sb  ==  a * d + b2
    a = (sw * gw) * inv_std                                    # (TB, TG, c_half, 1)
    b2 = sw * gnb + sb                                         # (c_half, 1)
    out_ref[:, :, c_half:, :] = x1 * jax.nn.sigmoid(a * d + b2)


def sa_layer(x, params, *, groups, block_bytes_budget=2 * 1024 * 1024):
    """x: (b, c, h, w) float32, NCHW.  Returns (b, c, h, w)."""
    b, c, h, w = x.shape
    assert c % (2 * groups) == 0
    c_per = c // groups
    c_half = c_per // 2
    hw = h * w

    cweight, cbias, sweight, sbias, gn_w, gn_b = params       # each (c_half, 1)
    p = jnp.stack([cweight, cbias, sweight, sbias, gn_w, gn_b], axis=0)  # (6,c_half,1)

    x_r = x.reshape(b, groups, c_per, hw)

    # Fused channel-shuffle output layout needs even groups (each group lands
    # entirely in one shuffle half) and a lane-aligned hw for the half-width
    # output block.
    fused_shuffle = (groups % 2 == 0) and (hw % 128 == 0)

    # ---- tile selection: batch several (b, group) slices per grid step ----
    slice_bytes = c_per * hw * x.dtype.itemsize
    max_units = max(1, block_bytes_budget // slice_bytes)
    tb = _largest_divisor_leq(b, max_units)
    rem = max(1, max_units // tb)

    if fused_shuffle:
        g2 = groups // 2
        tg = _largest_divisor_leq(g2, rem)
        n_gb_half = g2 // tg
        n_gb = 2 * n_gb_half                                    # always even
        out_shape = jax.ShapeDtypeStruct((b, g2, c_per, 2 * hw), x.dtype)
        if n_gb_half == 1:
            out_index = lambda bi, gb: (bi, 0, 0, gb)
        else:
            out_index = lambda bi, gb: (bi, gb % n_gb_half, 0, gb // n_gb_half)
        out_spec = pl.BlockSpec((tb, tg, c_per, hw), out_index)
    else:
        # TODO(synk): odd `groups` / unaligned hw keep the pre-shuffle layout
        # and do channel_shuffle as a plain JAX reshape/transpose.
        tg = _largest_divisor_leq(groups, rem)
        n_gb = groups // tg
        out_shape = jax.ShapeDtypeStruct((b, groups, c_per, hw), x.dtype)
        out_spec = pl.BlockSpec((tb, tg, c_per, hw), lambda bi, gb: (bi, gb, 0, 0))

    grid = (b // tb, n_gb)

    n_elem = b * c * hw
    cost = pl.CostEstimate(
        flops=6 * n_elem,
        transcendentals=n_elem // 2,
        bytes_accessed=2 * n_elem * x.dtype.itemsize + p.size * p.dtype.itemsize,
    )

    out = pl.pallas_call(
        functools.partial(_sa_kernel, c_half=c_half, inv_hw=1.0 / hw),
        out_shape=out_shape,
        grid_spec=pltpu.PrefetchScalarGridSpec(
            num_scalar_prefetch=0,
            grid=grid,
            in_specs=[
                pl.BlockSpec((6, c_half, 1), lambda bi, gb: (0, 0, 0)),
                pl.BlockSpec((tb, tg, c_per, hw), lambda bi, gb: (bi, gb, 0, 0)),
            ],
            out_specs=out_spec,
        ),
        compiler_params=pltpu.CompilerParams(
            dimension_semantics=("parallel", "parallel"),
            vmem_limit_bytes=32 * 1024 * 1024,
        ),
        cost_estimate=cost,
    )(p, x_r)

    if fused_shuffle:
        # (b, g2, c_per, 2, hw) contiguously == shuffled channel order
        # ((g2*c_per + ch)*2 + half), so this reshape is free (no transpose).
        return out.reshape(b, c, h, w)
    else:
        out = out.reshape(b, c, h, w)
        out = out.reshape(b, 2, c // 2, h, w).transpose(0, 2, 1, 3, 4)
        return out.reshape(b, c, h, w)


def _reference(x, params, *, groups):
    """Pure-JAX reference mirroring the PyTorch forward."""
    cweight, cbias, sweight, sbias, gn_w, gn_b = params
    b, c, h, w = x.shape
    c_half = c // (2 * groups)
    xr = x.reshape(b * groups, c // groups, h, w)
    x0, x1 = xr[:, :c_half], xr[:, c_half:]
    # channel branch
    xn = jnp.mean(x0, axis=(2, 3), keepdims=True)
    xn = cweight.reshape(1, c_half, 1, 1) * xn + cbias.reshape(1, c_half, 1, 1)
    xn = x0 * jax.nn.sigmoid(xn)
    # GroupNorm (per-channel)
    mean = jnp.mean(x1, axis=(2, 3), keepdims=True)
    var = jnp.mean((x1 - mean) ** 2, axis=(2, 3), keepdims=True)
    xs = (x1 - mean) / jnp.sqrt(var + GN_EPS)
    xs = xs * gn_w.reshape(1, c_half, 1, 1) + gn_b.reshape(1, c_half, 1, 1)
    xs = sweight.reshape(1, c_half, 1, 1) * xs + sbias.reshape(1, c_half, 1, 1)
    xs = x1 * jax.nn.sigmoid(xs)
    out = jnp.concatenate([xn, xs], axis=1).reshape(b, c, h, w)
    out = out.reshape(b, 2, c // 2, h, w).transpose(0, 2, 1, 3, 4)
    return out.reshape(b, c, h, w)


if __name__ == "__main__":
    b, c, h, w = 2, 32, 16, 16
    groups = 2
    c_half = c // (2 * groups)

    key = jax.random.PRNGKey(0)
    kx, k1, k2, k3, k4, k5, k6 = jax.random.split(key, 7)
    x = jax.random.normal(kx, (b, c, h, w), dtype=jnp.float32)

    # Deterministic (non-trivial) parameter init; PyTorch would init
    # cweight/sweight=0, cbias/sbias=1, gn weight=1, gn bias=0.
    params = (
        jax.random.normal(k1, (c_half, 1), dtype=jnp.float32) * 0.5,        # cweight
        jax.random.normal(k2, (c_half, 1), dtype=jnp.float32) * 0.5,        # cbias
        jax.random.normal(k3, (c_half, 1), dtype=jnp.float32) * 0.5,        # sweight
        jax.random.normal(k4, (c_half, 1), dtype=jnp.float32) * 0.5,        # sbias
        1.0 + jax.random.normal(k5, (c_half, 1), dtype=jnp.float32) * 0.1,  # gn w
        jax.random.normal(k6, (c_half, 1), dtype=jnp.float32) * 0.1,        # gn b
    )

    out = sa_layer(x, params, groups=groups)
    out = jax.block_until_ready(out)

    ref = _reference(x, params, groups=groups)
    assert out.shape == (b, c, h, w)
    assert jnp.allclose(out, ref, atol=1e-5, rtol=1e-5), "mismatch vs reference"

    print("KERNEL_OK")
</pallas_src>

<mosaic_0001>
module attributes {stable_mosaic.version = 11 : i64} {
  func.func @_sa_kernel(%arg0: i32, %arg1: i32, %arg2: memref<6x8x1xf32, #tpu.memory_space<vmem>>, %arg3: memref<2x1x16x256xf32, #tpu.memory_space<vmem>>, %arg4: memref<2x1x16x256xf32, #tpu.memory_space<vmem>>) attributes {dimension_semantics = [#tpu.dimension_semantics<parallel>, #tpu.dimension_semantics<parallel>], iteration_bounds = array<i64: 1, 2>, scalar_prefetch = 0 : i64, scratch_operands = 0 : i64, tpu.core_type = #tpu.core_type<tc>, window_params = [{pipeline_mode = #tpu.pipeline_mode<synchronous>, transform_indices = @transform_0, window_bounds = array<i64: 6, 8, 1>}, {transform_indices = @transform_1, window_bounds = array<i64: 2, 1, 16, 256>}, {transform_indices = @transform_2, window_bounds = array<i64: 2, 1, 16, 256>}]} {
    %c0 = arith.constant 0 : index
    %c0_0 = arith.constant 0 : index
    %c0_1 = arith.constant 0 : index
    %c0_2 = arith.constant 0 : index
    %0 = vector.load %arg3[%c0, %c0_0, %c0_1, %c0_2] : memref<2x1x16x256xf32, #tpu.memory_space<vmem>>, vector<2x1x8x256xf32>
    %cst = arith.constant dense<0.000000e+00> : vector<2x1x8xf32>
    %1 = vector.multi_reduction <add>, %0, %cst [3] : vector<2x1x8x256xf32> to vector<2x1x8xf32>
    %2 = vector.shape_cast %1 : vector<2x1x8xf32> to vector<2x1x8x1xf32>
    %cst_3 = arith.constant 3.906250e-03 : f32
    %3 = vector.broadcast %cst_3 : f32 to vector<2x1x8x1xf32>
    %4 = arith.mulf %2, %3 : vector<2x1x8x1xf32>
    %c0_4 = arith.constant 0 : index
    %c0_5 = arith.constant 0 : index
    %c0_6 = arith.constant 0 : index
    %5 = vector.load %arg2[%c0_4, %c0_5, %c0_6] : memref<6x8x1xf32, #tpu.memory_space<vmem>>, vector<1x8x1xf32>
    %6 = vector.shape_cast %5 : vector<1x8x1xf32> to vector<8x1xf32>
    %7 = vector.shape_cast %6 : vector<8x1xf32> to vector<1x1x8x1xf32>
    %8 = vector.broadcast %7 : vector<1x1x8x1xf32> to vector<2x1x8x1xf32>
    %9 = arith.mulf %8, %4 : vector<2x1x8x1xf32>
    %c1 = arith.constant 1 : index
    %c0_7 = arith.constant 0 : index
    %c0_8 = arith.constant 0 : index
    %10 = vector.load %arg2[%c1, %c0_7, %c0_8] : memref<6x8x1xf32, #tpu.memory_space<vmem>>, vector<1x8x1xf32>
    %11 = vector.shape_cast %10 : vector<1x8x1xf32> to vector<8x1xf32>
    %12 = vector.shape_cast %11 : vector<8x1xf32> to vector<1x1x8x1xf32>
    %13 = vector.broadcast %12 : vector<1x1x8x1xf32> to vector<2x1x8x1xf32>
    %14 = arith.addf %9, %13 : vector<2x1x8x1xf32>
    %15 = arith.negf %14 : vector<2x1x8x1xf32>
    %16 = math.exp %15 : vector<2x1x8x1xf32>
    %cst_9 = arith.constant 1.000000e+00 : f32
    %17 = vector.broadcast %cst_9 : f32 to vector<2x1x8x1xf32>
    %18 = arith.addf %17, %16 : vector<2x1x8x1xf32>
    %19 = arith.divf %17, %18 : vector<2x1x8x1xf32>
    %20 = vector.broadcast %19 : vector<2x1x8x1xf32> to vector<2x1x8x256xf32>
    %21 = arith.mulf %0, %20 : vector<2x1x8x256xf32>
    %c0_10 = arith.constant 0 : index
    %c0_11 = arith.constant 0 : index
    %c0_12 = arith.constant 0 : index
    %c0_13 = arith.constant 0 : index
    %22 = vector.load %arg4[%c0_10, %c0_11, %c0_12, %c0_13] : memref<2x1x16x256xf32, #tpu.memory_space<vmem>>, vector<2x1x8x256xf32>
    tpu.vector_store %arg4[%c0_10, %c0_11, %c0_12, %c0_13], %21 {strides = array<i32>} : memref<2x1x16x256xf32, #tpu.memory_space<vmem>>, vector<2x1x8x256xf32>,
    %c0_14 = arith.constant 0 : index
    %c0_15 = arith.constant 0 : index
    %c8 = arith.constant 8 : index
    %c0_16 = arith.constant 0 : index
    %23 = vector.load %arg3[%c0_14, %c0_15, %c8, %c0_16] : memref<2x1x16x256xf32, #tpu.memory_space<vmem>>, vector<2x1x8x256xf32>
    %c2 = arith.constant 2 : index
    %c0_17 = arith.constant 0 : index
    %c0_18 = arith.constant 0 : index
    %24 = vector.load %arg2[%c2, %c0_17, %c0_18] : memref<6x8x1xf32, #tpu.memory_space<vmem>>, vector<1x8x1xf32>
    %25 = vector.shape_cast %24 : vector<1x8x1xf32> to vector<8x1xf32>
    %c3 = arith.constant 3 : index
    %c0_19 = arith.constant 0 : index
    %c0_20 = arith.constant 0 : index
    %26 = vector.load %arg2[%c3, %c0_19, %c0_20] : memref<6x8x1xf32, #tpu.memory_space<vmem>>, vector<1x8x1xf32>
    %27 = vector.shape_cast %26 : vector<1x8x1xf32> to vector<8x1xf32>
    %c4 = arith.constant 4 : index
    %c0_21 = arith.constant 0 : index
    %c0_22 = arith.constant 0 : index
    %28 = vector.load %arg2[%c4, %c0_21, %c0_22] : memref<6x8x1xf32, #tpu.memory_space<vmem>>, vector<1x8x1xf32>
    %29 = vector.shape_cast %28 : vector<1x8x1xf32> to vector<8x1xf32>
    %c5 = arith.constant 5 : index
    %c0_23 = arith.constant 0 : index
    %c0_24 = arith.constant 0 : index
    %30 = vector.load %arg2[%c5, %c0_23, %c0_24] : memref<6x8x1xf32, #tpu.memory_space<vmem>>, vector<1x8x1xf32>
    %31 = vector.shape_cast %30 : vector<1x8x1xf32> to vector<8x1xf32>
    %cst_25 = arith.constant dense<0.000000e+00> : vector<2x1x8xf32>
    %32 = vector.multi_reduction <add>, %23, %cst_25 [3] : vector<2x1x8x256xf32> to vector<2x1x8xf32>
    %33 = vector.shape_cast %32 : vector<2x1x8xf32> to vector<2x1x8x1xf32>
    %cst_26 = arith.constant 3.906250e-03 : f32
    %34 = vector.broadcast %cst_26 : f32 to vector<2x1x8x1xf32>
    %35 = arith.mulf %33, %34 : vector<2x1x8x1xf32>
    %36 = vector.broadcast %35 : vector<2x1x8x1xf32> to vector<2x1x8x256xf32>
    %37 = arith.subf %23, %36 : vector<2x1x8x256xf32>
    %38 = arith.mulf %37, %37 : vector<2x1x8x256xf32>
    %cst_27 = arith.constant dense<0.000000e+00> : vector<2x1x8xf32>
    %39 = vector.multi_reduction <add>, %38, %cst_27 [3] : vector<2x1x8x256xf32> to vector<2x1x8xf32>
    %40 = vector.shape_cast %39 : vector<2x1x8xf32> to vector<2x1x8x1xf32>
    %cst_28 = arith.constant 3.906250e-03 : f32
    %41 = vector.broadcast %cst_28 : f32 to vector<2x1x8x1xf32>
    %42 = arith.mulf %40, %41 : vector<2x1x8x1xf32>
    %cst_29 = arith.constant 9.99999974E-6 : f32
    %43 = vector.broadcast %cst_29 : f32 to vector<2x1x8x1xf32>
    %44 = arith.addf %42, %43 : vector<2x1x8x1xf32>
    %45 = math.rsqrt %44 : vector<2x1x8x1xf32>
    %46 = arith.mulf %25, %29 : vector<8x1xf32>
    %47 = vector.shape_cast %46 : vector<8x1xf32> to vector<1x1x8x1xf32>
    %48 = vector.broadcast %47 : vector<1x1x8x1xf32> to vector<2x1x8x1xf32>
    %49 = arith.mulf %48, %45 : vector<2x1x8x1xf32>
    %50 = arith.mulf %25, %31 : vector<8x1xf32>
    %51 = arith.addf %50, %27 : vector<8x1xf32>
    %52 = vector.broadcast %49 : vector<2x1x8x1xf32> to vector<2x1x8x256xf32>
    %53 = arith.mulf %52, %37 : vector<2x1x8x256xf32>
    %54 = vector.shape_cast %51 : vector<8x1xf32> to vector<1x1x8x1xf32>
    %55 = vector.broadcast %54 : vector<1x1x8x1xf32> to vector<2x1x8x256xf32>
    %56 = arith.addf %53, %55 : vector<2x1x8x256xf32>
    %57 = arith.negf %56 : vector<2x1x8x256xf32>
    %58 = math.exp %57 : vector<2x1x8x256xf32>
    %cst_30 = arith.constant 1.000000e+00 : f32
    %59 = vector.broadcast %cst_30 : f32 to vector<2x1x8x256xf32>
    %60 = arith.addf %59, %58 : vector<2x1x8x256xf32>
    %61 = arith.divf %59, %60 : vector<2x1x8x256xf32>
    %62 = arith.mulf %23, %61 : vector<2x1x8x256xf32>
    %c0_31 = arith.constant 0 : index
    %c0_32 = arith.constant 0 : index
    %c8_33 = arith.constant 8 : index
    %c0_34 = arith.constant 0 : index
    %63 = vector.load %arg4[%c0_31, %c0_32, %c8_33, %c0_34] : memref<2x1x16x256xf32, #tpu.memory_space<vmem>>, vector<2x1x8x256xf32>
    tpu.vector_store %arg4[%c0_31, %c0_32, %c8_33, %c0_34], %62 {strides = array<i32>} : memref<2x1x16x256xf32, #tpu.memory_space<vmem>>, vector<2x1x8x256xf32>,
    return
  }
  func.func @transform_0(%arg0: i32, %arg1: i32) -> (i32, i32, i32) {
    %c0_i32 = arith.constant 0 : i32
    %c0_i32_0 = arith.constant 0 : i32
    %c0_i32_1 = arith.constant 0 : i32
    %c0_i32_2 = arith.constant 0 : i32
    return %c0_i32, %c0_i32_0, %c0_i32_1 : i32, i32, i32
  }
  func.func @transform_1(%arg0: i32, %arg1: i32) -> (i32, i32, i32, i32) {
    %c0_i32 = arith.constant 0 : i32
    %c0_i32_0 = arith.constant 0 : i32
    %c0_i32_1 = arith.constant 0 : i32
    return %arg0, %arg1, %c0_i32, %c0_i32_0 : i32, i32, i32, i32
  }
  func.func @transform_2(%arg0: i32, %arg1: i32) -> (i32, i32, i32, i32) {
    %c0_i32 = arith.constant 0 : i32
    %c0_i32_0 = arith.constant 0 : i32
    %c0_i32_1 = arith.constant 0 : i32
    return %arg0, %c0_i32, %c0_i32_0, %arg1 : i32, i32, i32, i32
  }
}

</mosaic_0001>

<llo_original>
// kernel: tpu_custom_call.1
$region0: #{tpu_custom_call.1}
  #allocation0 [shape = 'u32[]', space=smem, size = 0x4, offset = 0x4, fixed_abs, tag = 'smem constant byte address 0x4 - core index']
  #allocation1 [shape = 'u32[144,128]{1,0:T(1,128)}', space=vmem, size = 0x12000, scoped, tag = 'internal scratch']
  #allocation6 [shape = 's32[]', space=sflag, size = 0x4, offset = 0, fixed_abs, tag = 'sflag constant byte address 0x0 - dummy sync flag']
  %s0 = inlined_call_operand.vmem [shape: f32[6,8,1], index: 0, kind: input, shape index: {}]
  %s1 = inlined_call_operand.hbm [shape: f32[2,2,16,256], index: 1, kind: input, shape index: {}]
  %s2 = inlined_call_operand.hbm [shape: f32[2,1,16,512], index: 2, kind: output, shape index: {}]
  %s3 = sld [smem:[#allocation0]]
  $region45: #{tpu_custom_call.1} parent=0
    _
  %s5 = ssub.s32 1, %s3
  %s6 = scalar_select 0, %s5, %s3
  $region1: #{tpu_custom_call.1} parent=0
    #allocation2 [shape = 'u8[65536]{0}', space=vmem, size = 0x10000, scoped, tag = 'input window, operand 1']
    #allocation3 [shape = 's32[2]{0}', space=sflag, size = 0x8, scoped, tag = 'scoped memory for tpu_custom_call.1']
    #allocation4 [shape = 's32[2]{0}', space=sflag, size = 0x8, scoped, tag = 'scoped memory for tpu_custom_call.1']
    #allocation5 [shape = 'u8[65536]{0}', space=vmem, size = 0x10000, scoped, tag = 'output window, operand 0']
    %7 = vsyncpa [#allocation3], 0
    %s8 = scalar_lea.sflag [#allocation3], 1
    %9 = vsyncpa %s8, 0
    %10 = vsyncpa [#allocation4], 0
    %s11 = scalar_lea.sflag [#allocation4], 1
    %12 = vsyncpa %s11, 0
    loop: start=0, step=1, limit=4
    $region2: #{tpu_custom_call.1} parent=1 // loop_pre_header
      _
    $region3: #{tpu_custom_call.1} parent=1 // loop_header
      %s14 = sphi 0, %s18
      %p15 = scmp.ge.s32.totalorder %s14, 4
      %s21 = sphi 0, %s33
      %s22 = sphi 0, %s29
      %s23 = sphi 0, %s21
      %s24 = sphi 0, %s22
      %s25 = sphi 0, %s23
      %s26 = sphi 0, %s24
      %s34 = sphi 0, %s34
      %s36 = sphi 0, %s34
      %s37 = sphi 0, %s36
      %s51 = sphi 0, %s37
      %s59 = sphi 0, %s61
      %s62 = sphi 0, %s59
      %s63 = sphi 0, %s62
      %s79 = sphi 0, %s63
      %s87 = sphi 0, %s89
      %s90 = sphi 0, %s87
      %s91 = sphi 0, %s90
      %s107 = sphi 0, %s91
    $region4: #{tpu_custom_call.1} parent=1 // loop_header_branch
      %17 = sbr.rel (%p15) target = $region8
    $region5: #{tpu_custom_call.1} parent=1 // loop_body
      %s19 = ssub.s32 %s14, 1
      %s20 = ssub.s32 %s14, 2
      %s27 = sadd.s32 1, %s22
      %p28 = scmp.ge.s32.totalorder %s27, 2
      %s29 = scalar_select %p28, 0, %s27
      %s30 = sadd.s32 1, %s21
      %s31 = scalar_select %p28, %s30, %s21
      %p32 = scmp.ge.s32.totalorder %s31, 1
      %s33 = scalar_select %p32, 0, %s31
      %s35 = sadd.s32 %s34, 1
      %p38 = scmp.eq.s32.totalorder %s14, 1
      %p39 = scmp.ne.s32.totalorder %s34, %s36
      %p40 = scmp.eq.s32.totalorder %s14, 0
      %p41 = por %p39, %p40
      %p42 = scmp.ne.s32.totalorder %s34, %s36
      %p43 = scmp.eq.s32.totalorder %s19, 1
      %p44 = por %p42, %p43
      %p45 = scmp.ne.s32.totalorder %s36, %s37
      %p46 = scmp.eq.s32.totalorder %s19, 0
      %p47 = por %p45, %p46
      %p48 = scmp.ne.s32.totalorder %s36, %s37
      %p49 = scmp.eq.s32.totalorder %s20, 1
      %p50 = por %p48, %p49
      %p52 = scmp.ne.s32.totalorder %s37, %s51
      %p53 = scmp.eq.s32.totalorder %s20, 0
      %p54 = por %p52, %p53
      %s55 = ssub.s32 %s21, %s33
      %s56 = ssub.s32 %s22, %s29
      %s57 = sor.u32 %s55, %s56
      %p58 = scmp.eq.s32.totalorder %s57, 0
      %s60 = sadd.s32 %s59, 1
      %s61 = scalar_select %p58, %s59, %s60
      %p64 = pneg %p58
      %p65 = scmp.eq.s32.totalorder %s14, 1
      %p66 = por %p64, %p65
      %p67 = scmp.ne.s32.totalorder %s59, %s62
      %p68 = scmp.eq.s32.totalorder %s14, 0
      %p69 = por %p67, %p68
      %p70 = scmp.ne.s32.totalorder %s59, %s62
      %p71 = scmp.eq.s32.totalorder %s19, 1
      %p72 = por %p70, %p71
      %p73 = scmp.ne.s32.totalorder %s62, %s63
      %p74 = scmp.eq.s32.totalorder %s19, 0
      %p75 = por %p73, %p74
      %p76 = scmp.ne.s32.totalorder %s62, %s63
      %p77 = scmp.eq.s32.totalorder %s20, 1
      %p78 = por %p76, %p77
      %p80 = scmp.ne.s32.totalorder %s63, %s79
      %p81 = scmp.eq.s32.totalorder %s20, 0
      %p82 = por %p80, %p81
      %s83 = ssub.s32 %s21, %s33
      %s84 = ssub.s32 %s22, %s29
      %s85 = sor.u32 %s83, %s84
      %p86 = scmp.eq.s32.totalorder %s85, 0
      %s88 = sadd.s32 %s87, 1
      %s89 = scalar_select %p86, %s87, %s88
      %p92 = pneg %p86
      %p93 = scmp.eq.s32.totalorder %s14, 1
      %p94 = por %p92, %p93
      %p95 = scmp.ne.s32.totalorder %s87, %s90
      %p96 = scmp.eq.s32.totalorder %s14, 0
      %p97 = por %p95, %p96
      %p98 = scmp.ne.s32.totalorder %s87, %s90
      %p99 = scmp.eq.s32.totalorder %s19, 1
      %p100 = por %p98, %p99
      %p101 = scmp.ne.s32.totalorder %s90, %s91
      %p102 = scmp.eq.s32.totalorder %s19, 0
      %p103 = por %p101, %p102
      %p104 = scmp.ne.s32.totalorder %s90, %s91
      %p105 = scmp.eq.s32.totalorder %s20, 1
      %p106 = por %p104, %p105
      %p108 = scmp.ne.s32.totalorder %s91, %s107
      %p109 = scmp.eq.s32.totalorder %s20, 0
      %p110 = por %p108, %p109
      %p111 = scmp.le.s32.totalorder 1, %s14
      %p112 = scmp.lt.s32.totalorder %s14, 3
      %p113 = pnand %p111, %p112
      %p114 = pneg %p113
      // Predicated region
      $region9: #{tpu_custom_call.1} parent=5 // pred_check
        _
      $region10: #{tpu_custom_call.1} parent=5 // pred_check_branch
        %116 = sbr.rel (%p113) target = $region12
      $region11: #{tpu_custom_call.1} parent=5 // pred_region
        %s117 = ssub.s32 %s14, 1
        // Predicated region
        $region13: #{tpu_custom_call.1} parent=11 // pred_check
          %p118 = pneg %p47
        $region14: #{tpu_custom_call.1} parent=11 // pred_check_branch
          %120 = sbr.rel (%p118) target = $region16
        $region15: #{tpu_custom_call.1} parent=11 // pred_region
          _
        $region16: #{tpu_custom_call.1} parent=11 // pred_fallthru
          _
      $region12: #{tpu_custom_call.1} parent=5 // pred_fallthru
        _
      %p121 = scmp.lt.s32.totalorder %s14, 2
      // Predicated region
      $region17: #{tpu_custom_call.1} parent=5 // pred_check
        %p122 = pneg %p121
      $region18: #{tpu_custom_call.1} parent=5 // pred_check_branch
        %124 = sbr.rel (%p122) target = $region20
      $region19: #{tpu_custom_call.1} parent=5 // pred_region
        // Predicated region
        $region21: #{tpu_custom_call.1} parent=19 // pred_check
          %p125 = pneg %p69
        $region22: #{tpu_custom_call.1} parent=19 // pred_check_branch
          %127 = sbr.rel (%p125) target = $region24
        $region23: #{tpu_custom_call.1} parent=19 // pred_region
          #allocation7 [shape = 'u32[6]{0}', space=smem, size = 0x18, scoped, tag = 'DMA stride descriptor']
          %s128 = sand.u32 %s59, 1
          %s129 = scalar_lea.sflag [#allocation3], %s128
          %s130 = sand.u32 %s59, 1
          %s131 = smul.addr %s130, 64
          %s132 = scalar_lea.vmem [#allocation2], %s131
          %s133 = smul.u32 2, %s21
          %s135 = ssub.s32 1024, 1024
          %136 = vsyncadd %s129, %s135
          %s137 = smul.addr %s22, 4
          %s138 = smul.addr %s133, 8
          %s139 = sadd.s32 %s137, %s138
          %s140 = smul.addr %s139, 128
          %s141 = scalar_lea.hbm %s1, %s140
          %s143 = sshll.u32 1, 14
          %s144 = sxor.u32 4294967295, %s143
          %s146 = sld [smem:[#allocation0]]
          %s147 = sadd.s32 2, %s146
          %s149 = sshll.u32 7, 26
          %s150 = sxor.u32 4294967295, %s149
          %s151 = sand.u32 0, %s150
          %s152 = sshll.u32 %s147, 26
          %s153 = sor.u32 %s151, %s152
          %s154 = sshll.u32 %s132, 4
          %s155 = int_to_ptr.vmem [resolvable:$true] %s154
          %161 = sst [smem:[#allocation7]] 1024
          %s162 = scalar_lea.smem [#allocation7], 1
          %163 = sst [smem:[%s162]] 512
          %s164 = scalar_lea.smem [#allocation7], 2
          %165 = sst [smem:[%s164]] 2
          %s166 = scalar_lea.smem [#allocation7], 3
          %167 = sst [smem:[%s166]] 256
          %s168 = scalar_lea.smem [#allocation7], 4
          %169 = sst [smem:[%s168]] 256
          %s170 = scalar_lea.smem [#allocation7], 5
          %171 = sst [smem:[%s170]] 16
          %173 = dma.general %s141, 1024, %s155, %s129, [#allocation6], [#allocation7], %s153, 0
        $region24: #{tpu_custom_call.1} parent=19 // pred_fallthru
          _
      $region20: #{tpu_custom_call.1} parent=5 // pred_fallthru
        _
      %p174 = scmp.le.s32.totalorder 1, %s14
      %p175 = scmp.lt.s32.totalorder %s14, 3
      %p176 = pnand %p174, %p175
      %p177 = pneg %p176
      // Predicated region
      $region25: #{tpu_custom_call.1} parent=5 // pred_check
        _
      $region26: #{tpu_custom_call.1} parent=5 // pred_check_branch
        %179 = sbr.rel (%p176) target = $region28
      $region27: #{tpu_custom_call.1} parent=5 // pred_region
        %s180 = ssub.s32 %s14, 1
        %s181 = sand.u32 %s62, 1
        %s182 = scalar_lea.sflag [#allocation3], %s181
        %s183 = sand.u32 %s62, 1
        %s184 = smul.addr %s183, 64
        %s185 = scalar_lea.vmem [#allocation2], %s184
        // Predicated region
        $region29: #{tpu_custom_call.1} parent=27 // pred_check
          %p186 = pneg %p75
        $region30: #{tpu_custom_call.1} parent=27 // pred_check_branch
          %188 = sbr.rel (%p186) target = $region32
        $region31: #{tpu_custom_call.1} parent=27 // pred_region
          %189 = dma.done %s182, 1024
        $region32: #{tpu_custom_call.1} parent=27 // pred_fallthru
          _
        %p190 = pneg %p47
        %p191 = pneg %p44
        %s192 = sand.u32 %s62, 1
        %s193 = scalar_lea.sflag [#allocation3], %s192
        %s194 = sand.u32 %s62, 1
        %s195 = smul.addr %s194, 64
        %s196 = scalar_lea.vmem [#allocation2], %s195
        %p197 = pneg %p75
        %p198 = pneg %p72
        %p199 = pneg %p103
        %p200 = pneg %p100
        %s201 = sand.u32 %s90, 1
        %s202 = scalar_lea.sflag [#allocation4], %s201
        %s203 = sand.u32 %s90, 1
        %s204 = smul.addr %s203, 64
        %s205 = scalar_lea.vmem [#allocation5], %s204
        %s206 = smul.u32 2, %s23
        %s207 = smul.u32 2, %s23
        %s208 = smul.u32 2, %s24
        %v209 = vld [vmem:[%s185] sm:$0xff]
        %v210 = vld [vmem:[%s185 + $0x8] sm:$0xff]
        %v211 = vld [vmem:[%s185 + $0x20] sm:$0xff]
        %v212 = vld [vmem:[%s185 + $0x28] sm:$0xff]
        %v213 = vadd.f32 %v209, %v210
        %214 = vadd.xlane.f32.xlu0 %v213
        %v215 = vpop.xlane.xlu0 %214
        %v216 = vadd.f32 %v211, %v212
        %217 = vadd.xlane.f32.xlu0 %v216
        %v218 = vpop.xlane.xlu0 %217
        %v219 = vmul.f32 %v215, 0.00390625
        %v220 = vmul.f32 %v218, 0.00390625
        %v221 = vld [vmem:[%s0] sm:$0xff]
        %v222 = vmul.f32 %v221, %v219
        %v223 = vmul.f32 %v221, %v220
        %s224 = scalar_lea.vmem %s0, 8
        %v225 = vld [vmem:[%s224] sm:$0xff]
        %v226 = vadd.f32 %v222, %v225
        %v227 = vadd.f32 %v223, %v225
        %v228 = vxor.u32 %v226, 2147483648
        %v229 = vxor.u32 %v227, 2147483648
        %v230 = vmul.f32 %v228, 1.442695
        %v231 = vpow.pop %v230
        %v232 = vmul.f32 %v229, 1.442695
        %v233 = vpow.pop %v232
        %v234 = vadd.f32 %v231, 1.0
        %v235 = vadd.f32 %v233, 1.0
        %v236 = vrcp.pop %v234
        %v237 = vmul.f32 1.0, %v236
        %v238 = vrcp.pop %v235
        %v239 = vmul.f32 1.0, %v238
        %241 = vset.pattern.permute.xlu0 0
        %242 = vperm.xlu0 %241, %v237
        %v243 = vpop.permute.xlu0 %242
        %246 = vset.pattern.permute.xlu0 0
        %247 = vperm.xlu0 %246, %v239
        %v248 = vpop.permute.xlu0 %247
        %v250 = vmul.f32 %v209, %v243
        %v251 = vmul.f32 %v210, %v243
        %v252 = vmul.f32 %v211, %v248
        %v253 = vmul.f32 %v212, %v248
        %254 = vst [vmem:[%s205] sm:$0xff] %v250
        %255 = vst [vmem:[%s205 + $0x8] sm:$0xff] %v251
        %256 = vst [vmem:[%s205 + $0x20] sm:$0xff] %v252
        %257 = vst [vmem:[%s205 + $0x28] sm:$0xff] %v253
        %v258 = vld [vmem:[%s185 + $0x10] sm:$0xff]
        %v259 = vld [vmem:[%s185 + $0x18] sm:$0xff]
        %v260 = vld [vmem:[%s185 + $0x30] sm:$0xff]
        %v261 = vld [vmem:[%s185 + $0x38] sm:$0xff]
        %s262 = scalar_lea.vmem %s0, 16
        %v263 = vld [vmem:[%s262] sm:$0xff]
        %s264 = scalar_lea.vmem %s0, 24
        %v265 = vld [vmem:[%s264] sm:$0xff]
        %s266 = scalar_lea.vmem %s0, 32
        %v267 = vld [vmem:[%s266] sm:$0xff]
        %s268 = scalar_lea.vmem %s0, 40
        %v269 = vld [vmem:[%s268] sm:$0xff]
        %v270 = vadd.f32 %v258, %v259
        %271 = vadd.xlane.f32.xlu0 %v270
        %v272 = vpop.xlane.xlu0 %271
        %v273 = vadd.f32 %v260, %v261
        %274 = vadd.xlane.f32.xlu0 %v273
        %v275 = vpop.xlane.xlu0 %274
        %v276 = vmul.f32 %v272, 0.00390625
        %v277 = vmul.f32 %v275, 0.00390625
        %v278 = vsub.f32 %v258, %v276
        %v279 = vsub.f32 %v259, %v276
        %v280 = vsub.f32 %v260, %v277
        %v281 = vsub.f32 %v261, %v277
        %v282 = vmul.f32 %v278, %v278
        %v283 = vmul.f32 %v279, %v279
        %v284 = vmul.f32 %v280, %v280
        %v285 = vmul.f32 %v281, %v281
        %v286 = vadd.f32 %v282, %v283
        %287 = vadd.xlane.f32.xlu0 %v286
        %v288 = vpop.xlane.xlu0 %287
        %v289 = vadd.f32 %v284, %v285
        %290 = vadd.xlane.f32.xlu0 %v289
        %v291 = vpop.xlane.xlu0 %290
        %v292 = vmul.f32 %v288, 0.00390625
        %v293 = vmul.f32 %v291, 0.00390625
        %v294 = vadd.f32 %v292, 1e-05
        %v295 = vadd.f32 %v293, 1e-05
        %v296 = vrsqrt.pop %v294
        %v297 = vrsqrt.pop %v295
        %v298 = vmul.f32 %v263, %v267
        %v299 = vmul.f32 %v298, %v296
        %v300 = vmul.f32 %v298, %v297
        %v301 = vmul.f32 %v263, %v269
        %v302 = vadd.f32 %v301, %v265
        %304 = vset.pattern.permute.xlu0 0
        %305 = vperm.xlu0 %304, %v299
        %v306 = vpop.permute.xlu0 %305
        %309 = vset.pattern.permute.xlu0 0
        %310 = vperm.xlu0 %309, %v300
        %v311 = vpop.permute.xlu0 %310
        %v313 = vmul.f32 %v306, %v278
        %v314 = vmul.f32 %v306, %v279
        %v315 = vmul.f32 %v311, %v280
        %v316 = vmul.f32 %v311, %v281
        %318 = vset.pattern.permute.xlu0 0
        %319 = vperm.xlu0 %318, %v302
        %v320 = vpop.permute.xlu0 %319
        %v322 = vadd.f32 %v313, %v320
        %v323 = vadd.f32 %v314, %v320
        %v324 = vadd.f32 %v315, %v320
        %v325 = vadd.f32 %v316, %v320
        %v326 = vxor.u32 %v322, 2147483648
        %v327 = vxor.u32 %v323, 2147483648
        %v328 = vxor.u32 %v324, 2147483648
        %v329 = vxor.u32 %v325, 2147483648
        %v330 = vmul.f32 %v326, 1.442695
        %v331 = vpow.pop %v330
        %v332 = vmul.f32 %v327, 1.442695
        %v333 = vpow.pop %v332
        %v334 = vmul.f32 %v328, 1.442695
        %v335 = vpow.pop %v334
        %v336 = vmul.f32 %v329, 1.442695
        %v337 = vpow.pop %v336
        %v338 = vadd.f32 %v331, 1.0
        %v339 = vadd.f32 %v333, 1.0
        %v340 = vadd.f32 %v335, 1.0
        %v341 = vadd.f32 %v337, 1.0
        %v342 = vrcp.pop %v338
        %v343 = vmul.f32 1.0, %v342
        %v344 = vrcp.pop %v339
        %v345 = vmul.f32 1.0, %v344
        %v346 = vrcp.pop %v340
        %v347 = vmul.f32 1.0, %v346
        %v348 = vrcp.pop %v341
        %v349 = vmul.f32 1.0, %v348
        %v350 = vmul.f32 %v258, %v343
        %v351 = vmul.f32 %v259, %v345
        %v352 = vmul.f32 %v260, %v347
        %v353 = vmul.f32 %v261, %v349
        %354 = vst [vmem:[%s205 + $0x10] sm:$0xff] %v350
        %355 = vst [vmem:[%s205 + $0x18] sm:$0xff] %v351
        %356 = vst [vmem:[%s205 + $0x30] sm:$0xff] %v352
        %357 = vst [vmem:[%s205 + $0x38] sm:$0xff] %v353
        %s358 = sand.u32 %s90, 1
        %s359 = scalar_lea.sflag [#allocation4], %s358
        %s360 = sand.u32 %s90, 1
        %s361 = smul.addr %s360, 64
        %s362 = scalar_lea.vmem [#allocation5], %s361
        // Predicated region
        $region33: #{tpu_custom_call.1} parent=27 // pred_check
          %p363 = pneg %p100
        $region34: #{tpu_custom_call.1} parent=27 // pred_check_branch
          %365 = sbr.rel (%p363) target = $region36
        $region35: #{tpu_custom_call.1} parent=27 // pred_region
          %s366 = smul.u32 2, %s23
          %s367 = smul.u32 2, %s24
          %s369 = ssub.s32 1024, 1024
          %370 = vsyncadd %s359, %s369
          %s371 = smul.addr %s366, 8
          %s372 = sadd.s32 %s367, %s371
          %s373 = smul.addr %s372, 128
          %s374 = scalar_lea.hbm %s2, %s373
          %s375 = sshll.u32 %s362, 4
          %s376 = int_to_ptr.vmem [resolvable:$true] %s375
          %381 = dma.vmem_to_hbm [thread:$0]  %s376, 1024, %s374, %s359, 256, 512, 16
        $region36: #{tpu_custom_call.1} parent=27 // pred_fallthru
          _
      $region28: #{tpu_custom_call.1} parent=5 // pred_fallthru
        _
      %p382 = scmp.le.s32.totalorder 2, %s14
      // Predicated region
      $region37: #{tpu_custom_call.1} parent=5 // pred_check
        %p383 = pneg %p382
      $region38: #{tpu_custom_call.1} parent=5 // pred_check_branch
        %385 = sbr.rel (%p383) target = $region40
      $region39: #{tpu_custom_call.1} parent=5 // pred_region
        %s386 = ssub.s32 %s14, 2
        // Predicated region
        $region41: #{tpu_custom_call.1} parent=39 // pred_check
          %p387 = pneg %p106
        $region42: #{tpu_custom_call.1} parent=39 // pred_check_branch
          %389 = sbr.rel (%p387) target = $region44
        $region43: #{tpu_custom_call.1} parent=39 // pred_region
          %s390 = sand.u32 %s91, 1
          %s391 = scalar_lea.sflag [#allocation4], %s390
          %s392 = sand.u32 %s91, 1
          %s393 = smul.addr %s392, 64
          %s394 = scalar_lea.vmem [#allocation5], %s393
          %395 = dma.done %s391, 1024
        $region44: #{tpu_custom_call.1} parent=39 // pred_fallthru
          _
      $region40: #{tpu_custom_call.1} parent=5 // pred_fallthru
        _
    $region6: #{tpu_custom_call.1} parent=1 // loop_footer
      %s18 = sadd.s32 1, %s14
    $region7: #{tpu_custom_call.1} parent=1 // loop_footer_branch
      %13 = sbr.rel target = $region3
    $region8: #{tpu_custom_call.1} parent=1 // loop_exit
      _
    %396 = vsyncpa [#allocation3], 1
    %s397 = scalar_lea.sflag [#allocation3], 1
    %398 = vsyncpa %s397, 1
    %399 = vsyncpa [#allocation4], 1
    %s400 = scalar_lea.sflag [#allocation4], 1
    %401 = vsyncpa %s400, 1

</llo_original>
